<compile_context>
chip_gen: v7x
topology: tpu7x:2x2x1
jax: 0.10.0
libtpu: 0.0.40
codegen_flags: <defaults>
</compile_context>

<pallas_src>
import jax
import jax.numpy as jnp
from jax.experimental import pallas as pl
from jax.experimental.pallas import tpu as pltpu


_H1, _H2 = 256, 128
_MAX_TB = 512  # batch tile: large multiple of 8 to amortize per-step overhead


def _reward_kernel(x_ref, w1_ref, b1_ref, w2_ref, b2_ref, w3r_ref, b3_ref,
                   out_ref):
    x = x_ref[...]                                                # [TB, S+A]
    h1 = jnp.dot(x, w1_ref[...], preferred_element_type=jnp.float32)
    h1 = jnp.maximum(h1 + b1_ref[...], 0.0)                       # [TB, 256]
    h2 = jnp.dot(h1, w2_ref[...], preferred_element_type=jnp.float32)
    h2 = jnp.maximum(h2 + b2_ref[...], 0.0)                       # [TB, 128]
    # Final 128->1 layer: multiply by the [1,128] weight row and lane-reduce
    # (VPU/XLU work, overlaps with next tile's MXU passes) instead of an
    # almost-empty N=1 MXU matmul.
    red = jnp.sum(h2 * w3r_ref[...], axis=-1, keepdims=True)      # [TB, 1]
    out_ref[...] = red + b3_ref[0, 0]


def _round_up(n, m):
    return ((n + m - 1) // m) * m


def reward_network_forward(state, action, params):
    """Pallas forward pass for RewardNetwork.

    state:  [B, state_dim] float32
    action: [B, action_dim] float32 (or [B] -> treated as [B, 1])
    params: dict with w1 [S+A,256], b1 [1,256], w2 [256,128], b2 [1,128],
            w3 [128,1], b3 [1,1]
    returns [B, 1] float32
    """
    if action.ndim == 1:
        action = action[:, None]
    state = state.astype(jnp.float32)
    action = action.astype(jnp.float32)

    # Concat once in the wrapper; the kernel then DMAs one contiguous tile.
    x = jnp.concatenate([state, action], axis=-1)                 # [B, S+A]
    B, feat = x.shape

    # Sublane-aligned batch tiling; pad the batch so every tile is full.
    tb = min(_MAX_TB, _round_up(B, 8))
    B_pad = _round_up(B, tb)
    if B_pad != B:
        x = jnp.pad(x, ((0, B_pad - B), (0, 0)))

    w1, b1 = params["w1"], params["b1"]
    w2, b2 = params["w2"], params["b2"]
    w3, b3 = params["w3"], params["b3"]
    w3_row = w3.reshape(1, _H2)       # [1, 128] row for multiply + lane-reduce
    b3 = b3.reshape(1, 1)             # scalar -> SMEM

    def const_spec(shape):            # weights stay VMEM-resident across steps
        return pl.BlockSpec(shape, lambda i: (0, 0))

    out = pl.pallas_call(
        _reward_kernel,
        out_shape=jax.ShapeDtypeStruct((B_pad, 1), jnp.float32),
        grid=(B_pad // tb,),
        in_specs=[
            pl.BlockSpec((tb, feat), lambda i: (i, 0)),           # x tiles
            const_spec(w1.shape), const_spec(b1.shape),
            const_spec(w2.shape), const_spec(b2.shape),
            const_spec(w3_row.shape),
            pl.BlockSpec(memory_space=pltpu.MemorySpace.SMEM),    # b3 scalar
        ],
        out_specs=pl.BlockSpec((tb, 1), lambda i: (i, 0)),
        compiler_params=pltpu.CompilerParams(
            dimension_semantics=("parallel",),                    # megacore on v7x
        ),
    )(x, w1, b1, w2, b2, w3_row, b3)

    return out[:B]


def init_params(key, state_dim, action_dim):
    """Deterministic synthetic init (shapes match nn.Linear layers)."""
    in_dim = state_dim + action_dim
    k1, k2, k3 = jax.random.split(key, 3)

    def lin(k, fan_in, fan_out):
        bound = 1.0 / jnp.sqrt(fan_in)
        kw, kb = jax.random.split(k)
        w = jax.random.uniform(kw, (fan_in, fan_out), jnp.float32, -bound, bound)
        b = jax.random.uniform(kb, (1, fan_out), jnp.float32, -bound, bound)
        return w, b

    w1, b1 = lin(k1, in_dim, _H1)
    w2, b2 = lin(k2, _H1, _H2)
    w3, b3 = lin(k3, _H2, 1)
    return {"w1": w1, "b1": b1, "w2": w2, "b2": b2, "w3": w3, "b3": b3}


def _ref_forward(state, action, params):
    if action.ndim == 1:
        action = action[:, None]
    x = jnp.concatenate([state, action], axis=-1)
    h1 = jnp.maximum(x @ params["w1"] + params["b1"], 0.0)
    h2 = jnp.maximum(h1 @ params["w2"] + params["b2"], 0.0)
    return h2 @ params["w3"] + params["b3"]


if __name__ == "__main__":
    key = jax.random.PRNGKey(0)
    k_s, k_a, k_p, k_s2, k_a2 = jax.random.split(key, 5)

    state_dim, action_dim = 12, 4
    params = init_params(k_p, state_dim, action_dim)

    # Case 1: aligned batch.
    batch = 8
    state = jax.random.normal(k_s, (batch, state_dim), jnp.float32)
    action = jax.random.normal(k_a, (batch, action_dim), jnp.float32)
    out = reward_network_forward(state, action, params)
    jax.block_until_ready(out)
    ref = _ref_forward(state, action, params)
    assert out.shape == (batch, 1)
    assert jnp.allclose(out, ref, atol=1e-5, rtol=1e-5)

    # Case 2: ragged batch (exercises the pad-and-slice path).
    batch2 = 10
    state2 = jax.random.normal(k_s2, (batch2, state_dim), jnp.float32)
    action2 = jax.random.normal(k_a2, (batch2, action_dim), jnp.float32)
    out2 = reward_network_forward(state2, action2, params)
    jax.block_until_ready(out2)
    ref2 = _ref_forward(state2, action2, params)
    assert out2.shape == (batch2, 1)
    assert jnp.allclose(out2, ref2, atol=1e-5, rtol=1e-5)

    print("KERNEL_OK")
</pallas_src>

<mosaic_0001>
module attributes {stable_mosaic.version = 11 : i64} {
  func.func @_reward_kernel(%arg0: i32, %arg1: memref<8x16xf32, #tpu.memory_space<vmem>>, %arg2: memref<16x256xf32, #tpu.memory_space<vmem>>, %arg3: memref<1x256xf32, #tpu.memory_space<vmem>>, %arg4: memref<256x128xf32, #tpu.memory_space<vmem>>, %arg5: memref<1x128xf32, #tpu.memory_space<vmem>>, %arg6: memref<1x128xf32, #tpu.memory_space<vmem>>, %arg7: memref<1x1xf32, #tpu.memory_space<smem>>, %arg8: memref<8x1xf32, #tpu.memory_space<vmem>>) attributes {dimension_semantics = [#tpu.dimension_semantics<parallel>], iteration_bounds = array<i64: 1>, scalar_prefetch = 0 : i64, scratch_operands = 0 : i64, tpu.core_type = #tpu.core_type<tc>, window_params = [{transform_indices = @transform_0, window_bounds = array<i64: 8, 16>}, {pipeline_mode = #tpu.pipeline_mode<synchronous>, transform_indices = @transform_1, window_bounds = array<i64: 16, 256>}, {pipeline_mode = #tpu.pipeline_mode<synchronous>, transform_indices = @transform_2, window_bounds = array<i64: 1, 256>}, {pipeline_mode = #tpu.pipeline_mode<synchronous>, transform_indices = @transform_3, window_bounds = array<i64: 256, 128>}, {pipeline_mode = #tpu.pipeline_mode<synchronous>, transform_indices = @transform_4, window_bounds = array<i64: 1, 128>}, {pipeline_mode = #tpu.pipeline_mode<synchronous>, transform_indices = @transform_5, window_bounds = array<i64: 1, 128>}, {transform_indices = @transform_6, window_bounds = array<i64: 1, 1>}, {transform_indices = @transform_7, window_bounds = array<i64: 8, 1>}]} {
    %c0 = arith.constant 0 : index
    %c0_0 = arith.constant 0 : index
    %0 = vector.load %arg1[%c0, %c0_0] : memref<8x16xf32, #tpu.memory_space<vmem>>, vector<8x16xf32>
    %c0_1 = arith.constant 0 : index
    %c0_2 = arith.constant 0 : index
    %1 = vector.load %arg2[%c0_1, %c0_2] : memref<16x256xf32, #tpu.memory_space<vmem>>, vector<16x256xf32>
    %cst = arith.constant dense<0.000000e+00> : vector<8x256xf32>
    %2 = tpu.matmul %0, %1, %cst {dimension_numbers = #tpu.dot_dimension_numbers<[1], [0], [0], [1], [0, 0, 1, 1], [], []>} : vector<8x16xf32>, vector<16x256xf32>, vector<8x256xf32> -> vector<8x256xf32>
    %c0_3 = arith.constant 0 : index
    %c0_4 = arith.constant 0 : index
    %3 = vector.load %arg3[%c0_3, %c0_4] : memref<1x256xf32, #tpu.memory_space<vmem>>, vector<1x256xf32>
    %4 = vector.broadcast %3 : vector<1x256xf32> to vector<8x256xf32>
    %5 = arith.addf %2, %4 : vector<8x256xf32>
    %cst_5 = arith.constant 0.000000e+00 : f32
    %6 = vector.broadcast %cst_5 : f32 to vector<8x256xf32>
    %7 = arith.maximumf %5, %6 : vector<8x256xf32>
    %c0_6 = arith.constant 0 : index
    %c0_7 = arith.constant 0 : index
    %8 = vector.load %arg4[%c0_6, %c0_7] : memref<256x128xf32, #tpu.memory_space<vmem>>, vector<256x128xf32>
    %cst_8 = arith.constant dense<0.000000e+00> : vector<8x128xf32>
    %9 = tpu.matmul %7, %8, %cst_8 {dimension_numbers = #tpu.dot_dimension_numbers<[1], [0], [0], [1], [0, 0, 1, 1], [], []>} : vector<8x256xf32>, vector<256x128xf32>, vector<8x128xf32> -> vector<8x128xf32>
    %c0_9 = arith.constant 0 : index
    %c0_10 = arith.constant 0 : index
    %10 = vector.load %arg5[%c0_9, %c0_10] : memref<1x128xf32, #tpu.memory_space<vmem>>, vector<1x128xf32>
    %11 = vector.broadcast %10 : vector<1x128xf32> to vector<8x128xf32>
    %12 = arith.addf %9, %11 : vector<8x128xf32>
    %cst_11 = arith.constant 0.000000e+00 : f32
    %13 = vector.broadcast %cst_11 : f32 to vector<8x128xf32>
    %14 = arith.maximumf %12, %13 : vector<8x128xf32>
    %c0_12 = arith.constant 0 : index
    %c0_13 = arith.constant 0 : index
    %15 = vector.load %arg6[%c0_12, %c0_13] : memref<1x128xf32, #tpu.memory_space<vmem>>, vector<1x128xf32>
    %16 = vector.broadcast %15 : vector<1x128xf32> to vector<8x128xf32>
    %17 = arith.mulf %14, %16 : vector<8x128xf32>
    %cst_14 = arith.constant dense<0.000000e+00> : vector<8xf32>
    %18 = vector.multi_reduction <add>, %17, %cst_14 [1] : vector<8x128xf32> to vector<8xf32>
    %19 = vector.shape_cast %18 : vector<8xf32> to vector<8x1xf32>
    %c0_15 = arith.constant 0 : index
    %c0_16 = arith.constant 0 : index
    %20 = memref.load %arg7[%c0_15, %c0_16] : memref<1x1xf32, #tpu.memory_space<smem>>
    %21 = vector.broadcast %20 : f32 to vector<8x1xf32>
    %22 = arith.addf %19, %21 : vector<8x1xf32>
    %c0_17 = arith.constant 0 : index
    %c0_18 = arith.constant 0 : index
    %23 = vector.load %arg8[%c0_17, %c0_18] : memref<8x1xf32, #tpu.memory_space<vmem>>, vector<8x1xf32>
    tpu.vector_store %arg8[%c0_17, %c0_18], %22 {strides = array<i32>} : memref<8x1xf32, #tpu.memory_space<vmem>>, vector<8x1xf32>,
    return
  }
  func.func @transform_0(%arg0: i32) -> (i32, i32) {
    %c0_i32 = arith.constant 0 : i32
    %c0_i32_0 = arith.constant 0 : i32
    return %arg0, %c0_i32 : i32, i32
  }
  func.func @transform_1(%arg0: i32) -> (i32, i32) {
    %c0_i32 = arith.constant 0 : i32
    %c0_i32_0 = arith.constant 0 : i32
    %c0_i32_1 = arith.constant 0 : i32
    return %c0_i32, %c0_i32_0 : i32, i32
  }
  func.func @transform_2(%arg0: i32) -> (i32, i32) {
    %c0_i32 = arith.constant 0 : i32
    %c0_i32_0 = arith.constant 0 : i32
    %c0_i32_1 = arith.constant 0 : i32
    return %c0_i32, %c0_i32_0 : i32, i32
  }
  func.func @transform_3(%arg0: i32) -> (i32, i32) {
    %c0_i32 = arith.constant 0 : i32
    %c0_i32_0 = arith.constant 0 : i32
    %c0_i32_1 = arith.constant 0 : i32
    return %c0_i32, %c0_i32_0 : i32, i32
  }
  func.func @transform_4(%arg0: i32) -> (i32, i32) {
    %c0_i32 = arith.constant 0 : i32
    %c0_i32_0 = arith.constant 0 : i32
    %c0_i32_1 = arith.constant 0 : i32
    return %c0_i32, %c0_i32_0 : i32, i32
  }
  func.func @transform_5(%arg0: i32) -> (i32, i32) {
    %c0_i32 = arith.constant 0 : i32
    %c0_i32_0 = arith.constant 0 : i32
    %c0_i32_1 = arith.constant 0 : i32
    return %c0_i32, %c0_i32_0 : i32, i32
  }
  func.func @transform_6(%arg0: i32) -> (i32, i32) {
    %c0_i32 = arith.constant 0 : i32
    %c0_i32_0 = arith.constant 0 : i32
    %c0_i32_1 = arith.constant 0 : i32
    return %c0_i32, %c0_i32_0 : i32, i32
  }
  func.func @transform_7(%arg0: i32) -> (i32, i32) {
    %c0_i32 = arith.constant 0 : i32
    %c0_i32_0 = arith.constant 0 : i32
    return %arg0, %c0_i32 : i32, i32
  }
}

</mosaic_0001>

<llo_original>
// kernel: tpu_custom_call.1
$region0: #{tpu_custom_call.1}
  #allocation0 [shape = 'u32[]', space=smem, size = 0x4, offset = 0x4, fixed_abs, tag = 'smem constant byte address 0x4 - core index']
  #allocation1 [shape = 'u32[144,128]{1,0:T(1,128)}', space=vmem, size = 0x12000, scoped, tag = 'internal scratch']
  #allocation2 [shape = 'f32[1,1]{1,0:T(1,128)S(6)}', space=smem, size = 0x200, scoped, tag = 'scoped memory for tpu_custom_call.1']
  %s0 = inlined_call_operand.hbm [shape: f32[8,16], index: 0, kind: input, shape index: {}]
  %s1 = inlined_call_operand.hbm [shape: f32[16,256], index: 1, kind: input, shape index: {}]
  %s2 = inlined_call_operand.vmem [shape: f32[1,256], index: 2, kind: input, shape index: {}]
  %s3 = inlined_call_operand.hbm [shape: f32[256,128], index: 3, kind: input, shape index: {}]
  %s4 = inlined_call_operand.vmem [shape: f32[1,128], index: 4, kind: input, shape index: {}]
  %s5 = inlined_call_operand.vmem [shape: f32[1,128], index: 5, kind: input, shape index: {}]
  %s6 = inlined_call_operand.<no memory space> [shape: f32[1,1], index: 6, kind: input, shape index: {}]
  %s7 = inlined_call_operand.vmem [shape: f32[8,1], index: 7, kind: output, shape index: {}]
  %s8 = sld [smem:[#allocation0]]
  $region50: #{tpu_custom_call.1} parent=0
    _
  %s10 = ssub.s32 1, %s8
  %s11 = scalar_select 0, %s10, %s8
  %12 = sst [smem:[#allocation2]] %s6
  $region1: #{tpu_custom_call.1} parent=0
    #allocation3 [shape = 'u8[4096]{0}', space=vmem, size = 0x1000, scoped, tag = 'input window, operand 0, single buffered']
    #allocation4 [shape = 's32[1]{0}', space=sflag, size = 0x4, scoped, tag = 'scoped memory for tpu_custom_call.1']
    #allocation5 [shape = 'u8[16384]{0}', space=vmem, size = 0x4000, scoped, tag = 'input window, operand 1, single buffered']
    #allocation6 [shape = 's32[1]{0}', space=sflag, size = 0x4, scoped, tag = 'scoped memory for tpu_custom_call.1']
    #allocation7 [shape = 'u8[131072]{0}', space=vmem, size = 0x20000, scoped, tag = 'input window, operand 3, single buffered']
    %13 = vsyncpa [#allocation4], 0
    %14 = vsyncpa [#allocation6], 0
    // Predicated region
    $region2: #{tpu_custom_call.1} parent=1 // pred_check
      _
    $region3: #{tpu_custom_call.1} parent=1 // pred_check_branch
      %16 = sbr.rel (0) target = $region5
    $region4: #{tpu_custom_call.1} parent=1 // pred_region
      %s18 = ssub.s32 128, 128
      %19 = vsyncadd [#allocation4], %s18
      %s21 = sshll.u32 [#allocation3], 4
      %s22 = int_to_ptr.vmem [resolvable:$true] %s21
      %24 = dma.hbm_to_vmem [thread:$0]  %s0, 128, %s22, [#allocation4]
    $region5: #{tpu_custom_call.1} parent=1 // pred_fallthru
      _
    // Predicated region
    $region6: #{tpu_custom_call.1} parent=1 // pred_check
      _
    $region7: #{tpu_custom_call.1} parent=1 // pred_check_branch
      %26 = sbr.rel (0) target = $region9
    $region8: #{tpu_custom_call.1} parent=1 // pred_region
      %s28 = ssub.s32 512, 512
      %29 = vsyncadd [#allocation6], %s28
      %s30 = sshll.u32 [#allocation5], 4
      %s31 = int_to_ptr.vmem [resolvable:$true] %s30
      %36 = dma.hbm_to_vmem [thread:$0]  %s1, 512, %s31, [#allocation6], 256, 256, 16
    $region9: #{tpu_custom_call.1} parent=1 // pred_fallthru
      _
    // Predicated region
    $region10: #{tpu_custom_call.1} parent=1 // pred_check
      _
    $region11: #{tpu_custom_call.1} parent=1 // pred_check_branch
      %38 = sbr.rel (0) target = $region13
    $region12: #{tpu_custom_call.1} parent=1 // pred_region
      _
    $region13: #{tpu_custom_call.1} parent=1 // pred_fallthru
      _
    // Predicated region
    $region14: #{tpu_custom_call.1} parent=1 // pred_check
      _
    $region15: #{tpu_custom_call.1} parent=1 // pred_check_branch
      %40 = sbr.rel (0) target = $region17
    $region16: #{tpu_custom_call.1} parent=1 // pred_region
      %s42 = ssub.s32 4096, 4096
      %43 = vsyncadd [#allocation6], %s42
      %s44 = sshll.u32 [#allocation7], 4
      %s45 = int_to_ptr.vmem [resolvable:$true] %s44
      %50 = dma.hbm_to_vmem [thread:$0]  %s3, 4096, %s45, [#allocation6], 128, 128, 8
    $region17: #{tpu_custom_call.1} parent=1 // pred_fallthru
      _
    // Predicated region
    $region18: #{tpu_custom_call.1} parent=1 // pred_check
      _
    $region19: #{tpu_custom_call.1} parent=1 // pred_check_branch
      %52 = sbr.rel (0) target = $region21
    $region20: #{tpu_custom_call.1} parent=1 // pred_region
      _
    $region21: #{tpu_custom_call.1} parent=1 // pred_fallthru
      _
    // Predicated region
    $region22: #{tpu_custom_call.1} parent=1 // pred_check
      _
    $region23: #{tpu_custom_call.1} parent=1 // pred_check_branch
      %54 = sbr.rel (0) target = $region25
    $region24: #{tpu_custom_call.1} parent=1 // pred_region
      _
    $region25: #{tpu_custom_call.1} parent=1 // pred_fallthru
      _
    // Predicated region
    $region26: #{tpu_custom_call.1} parent=1 // pred_check
      _
    $region27: #{tpu_custom_call.1} parent=1 // pred_check_branch
      %56 = sbr.rel (0) target = $region29
    $region28: #{tpu_custom_call.1} parent=1 // pred_region
      _
    $region29: #{tpu_custom_call.1} parent=1 // pred_fallthru
      _
    // Predicated region
    $region30: #{tpu_custom_call.1} parent=1 // pred_check
      _
    $region31: #{tpu_custom_call.1} parent=1 // pred_check_branch
      %58 = sbr.rel (0) target = $region33
    $region32: #{tpu_custom_call.1} parent=1 // pred_region
      %59 = dma.done [#allocation4], 128
    $region33: #{tpu_custom_call.1} parent=1 // pred_fallthru
      _
    // Predicated region
    $region34: #{tpu_custom_call.1} parent=1 // pred_check
      _
    $region35: #{tpu_custom_call.1} parent=1 // pred_check_branch
      %61 = sbr.rel (0) target = $region37
    $region36: #{tpu_custom_call.1} parent=1 // pred_region
      %62 = dma.done [#allocation6], 512
    $region37: #{tpu_custom_call.1} parent=1 // pred_fallthru
      _
    // Predicated region
    $region38: #{tpu_custom_call.1} parent=1 // pred_check
      _
    $region39: #{tpu_custom_call.1} parent=1 // pred_check_branch
      %64 = sbr.rel (0) target = $region41
    $region40: #{tpu_custom_call.1} parent=1 // pred_region
      %65 = dma.done [#allocation6], 4096
    $region41: #{tpu_custom_call.1} parent=1 // pred_fallthru
      _
    %v66 = vld [vmem:[#allocation3] sm:$0xff]
    %v67 = vld [vmem:[#allocation5] sm:$0xff]
    %v68 = vld [vmem:[#allocation5 + $0x8] sm:$0xff]
    %v69 = vld [vmem:[#allocation5 + $0x10] sm:$0xff]
    %v70 = vld [vmem:[#allocation5 + $0x18] sm:$0xff]
    %v71 = vld [vmem:[%s2] sm:$0x3]
    %v73 = vlaneseq
    %v74 = vshrl.u32 %v73, 7
    %v75 = vsub.s32 0, %v74
    %v76 = vrot.slane %v71, %v75
    %v77 = vlaneseq
    %v78 = vshrl.u32 %v77, 7
    %v79 = vsub.s32 1, %v78
    %v80 = vrot.slane %v71, %v79
    %vm83 = vcmask 130048
    %v85 = vsel %vm83, %v66, 0
    %87 = vmatprep.subr.mxu0 %v68
    %88 = vmatpush1.msra.mxu0 %v67
    %89 = vmatprep.subr.mxu0 %v70
    %90 = vmatpush1.msra.mxu0 %v69
    %91 = vmatprep.subr.mxu0 0.0
    %92 = vmatpush1.msra.mxu0 0.0
    %93 = vmatprep.subr.mxu0 0.0
    %94 = vmatpush1.msra.mxu0 0.0
    %95 = vmatprep.subr.mxu0 0.0
    %96 = vmatpush1.msra.mxu0 0.0
    %97 = vmatprep.subr.mxu0 0.0
    %98 = vmatpush1.msra.mxu0 0.0
    %99 = vmatprep.subr.mxu0 0.0
    %100 = vmatpush1.msra.mxu0 0.0
    %101 = vmatprep.subr.mxu0 0.0
    %102 = vmatpush1.msra.mxu0 0.0
    %103 = vmatprep.subr.mxu0 0.0
    %104 = vmatpush1.msra.mxu0 0.0
    %105 = vmatprep.subr.mxu0 0.0
    %106 = vmatpush1.msra.mxu0 0.0
    %107 = vmatprep.subr.mxu0 0.0
    %108 = vmatpush1.msra.mxu0 0.0
    %109 = vmatprep.subr.mxu0 0.0
    %110 = vmatpush1.msra.mxu0 0.0
    %111 = vmatprep.subr.mxu0 0.0
    %112 = vmatpush1.msra.mxu0 0.0
    %113 = vmatprep.subr.mxu0 0.0
    %114 = vmatpush1.msra.mxu0 0.0
    %115 = vmatprep.subr.mxu0 0.0
    %116 = vmatpush1.msra.mxu0 0.0
    %117 = vmatprep.subr.mxu0 0.0
    %118 = vmatpush1.msra.mxu0 0.0
    %119 = vmatprep.subr.mxu0 0.0
    %120 = vmatpush1.msra.mxu0 0.0
    %121 = vmatprep.subr.mxu0 0.0
    %122 = vmatpush1.msra.mxu0 0.0
    %123 = vmatprep.subr.mxu0 0.0
    %124 = vmatpush1.msra.mxu0 0.0
    %125 = vmatprep.subr.mxu0 0.0
    %126 = vmatpush1.msra.mxu0 0.0
    %127 = vmatprep.subr.mxu0 0.0
    %128 = vmatpush1.msra.mxu0 0.0
    %129 = vmatprep.subr.mxu0 0.0
    %130 = vmatpush1.msra.mxu0 0.0
    %131 = vmatprep.subr.mxu0 0.0
    %132 = vmatpush1.msra.mxu0 0.0
    %133 = vmatprep.subr.mxu0 0.0
    %134 = vmatpush1.msra.mxu0 0.0
    %135 = vmatprep.subr.mxu0 0.0
    %136 = vmatpush1.msra.mxu0 0.0
    %137 = vmatprep.subr.mxu0 0.0
    %138 = vmatpush1.msra.mxu0 0.0
    %139 = vmatprep.subr.mxu0 0.0
    %140 = vmatpush1.msra.mxu0 0.0
    %141 = vmatprep.subr.mxu0 0.0
    %142 = vmatpush1.msra.mxu0 0.0
    %143 = vmatprep.subr.mxu0 0.0
    %144 = vmatpush1.msra.mxu0 0.0
    %145 = vmatprep.subr.mxu0 0.0
    %146 = vmatpush1.msra.mxu0 0.0
    %147 = vmatprep.subr.mxu0 0.0
    %148 = vmatpush1.msra.mxu0 0.0
    %149 = vmatprep.subr.mxu0 0.0
    %150 = vmatpush1.msra.mxu0 0.0
    %151 = vmatprep.mubr.f32.mxu0 0.0
    %152 = vmatmul.mubr.f32.gmra.mrb[0].mxu0 %v85
    %v153 = vpop.f32.mrb[0].mxu0
    %v154 = vadd.f32 %v76, %v153
    %v155 = vpop.f32.mrb[0].mxu0
    %v156 = vadd.f32 %v80, %v155
    %157 = vdwg.mxu0
    %v158 = vmax.f32 %v154, 0.0
    %v159 = vmax.f32 %v156, 0.0
    %v160 = vld [vmem:[#allocation7] sm:$0xff]
    %v161 = vld [vmem:[#allocation7 + $0x8] sm:$0xff]
    %v162 = vld [vmem:[#allocation7 + $0x10] sm:$0xff]
    %v163 = vld [vmem:[#allocation7 + $0x18] sm:$0xff]
    %v164 = vld [vmem:[#allocation7 + $0x20] sm:$0xff]
    %v165 = vld [vmem:[#allocation7 + $0x28] sm:$0xff]
    %v166 = vld [vmem:[#allocation7 + $0x30] sm:$0xff]
    %v167 = vld [vmem:[#allocation7 + $0x38] sm:$0xff]
    %v168 = vld [vmem:[#allocation7 + $0x40] sm:$0xff]
    %v169 = vld [vmem:[#allocation7 + $0x48] sm:$0xff]
    %v170 = vld [vmem:[#allocation7 + $0x50] sm:$0xff]
    %v171 = vld [vmem:[#allocation7 + $0x58] sm:$0xff]
    %v172 = vld [vmem:[#allocation7 + $0x60] sm:$0xff]
    %v173 = vld [vmem:[#allocation7 + $0x68] sm:$0xff]
    %v174 = vld [vmem:[#allocation7 + $0x70] sm:$0xff]
    %v175 = vld [vmem:[#allocation7 + $0x78] sm:$0xff]
    %v176 = vld [vmem:[#allocation7 + $0x80] sm:$0xff]
    %v177 = vld [vmem:[#allocation7 + $0x88] sm:$0xff]
    %v178 = vld [vmem:[#allocation7 + $0x90] sm:$0xff]
    %v179 = vld [vmem:[#allocation7 + $0x98] sm:$0xff]
    %v180 = vld [vmem:[#allocation7 + $0xa0] sm:$0xff]
    %v181 = vld [vmem:[#allocation7 + $0xa8] sm:$0xff]
    %v182 = vld [vmem:[#allocation7 + $0xb0] sm:$0xff]
    %v183 = vld [vmem:[#allocation7 + $0xb8] sm:$0xff]
    %v184 = vld [vmem:[#allocation7 + $0xc0] sm:$0xff]
    %v185 = vld [vmem:[#allocation7 + $0xc8] sm:$0xff]
    %v186 = vld [vmem:[#allocation7 + $0xd0] sm:$0xff]
    %v187 = vld [vmem:[#allocation7 + $0xd8] sm:$0xff]
    %v188 = vld [vmem:[#allocation7 + $0xe0] sm:$0xff]
    %v189 = vld [vmem:[#allocation7 + $0xe8] sm:$0xff]
    %v190 = vld [vmem:[#allocation7 + $0xf0] sm:$0xff]
    %v191 = vld [vmem:[#allocation7 + $0xf8] sm:$0xff]
    %v192 = vld [vmem:[%s4] sm:$0x1]
    %v194 = vlaneseq
    %v195 = vshrl.u32 %v194, 7
    %v196 = vsub.s32 0, %v195
    %v197 = vrot.slane %v192, %v196
    %199 = vmatprep.subr.mxu0 0.0
    %200 = vmatpush1.msra.mxu0 %v160
    %201 = vmatprep.subr.mxu0 0.0
    %202 = vmatpush1.msra.mxu0 %v161
    %203 = vmatprep.subr.mxu0 0.0
    %204 = vmatpush1.msra.mxu0 %v162
    %205 = vmatprep.subr.mxu0 0.0
    %206 = vmatpush1.msra.mxu0 %v163
    %207 = vmatprep.subr.mxu0 0.0
    %208 = vmatpush1.msra.mxu0 %v164
    %209 = vmatprep.subr.mxu0 0.0
    %210 = vmatpush1.msra.mxu0 %v165
    %211 = vmatprep.subr.mxu0 0.0
    %212 = vmatpush1.msra.mxu0 %v166
    %213 = vmatprep.subr.mxu0 0.0
    %214 = vmatpush1.msra.mxu0 %v167
    %215 = vmatprep.subr.mxu0 0.0
    %216 = vmatpush1.msra.mxu0 %v168
    %217 = vmatprep.subr.mxu0 0.0
    %218 = vmatpush1.msra.mxu0 %v169
    %219 = vmatprep.subr.mxu0 0.0
    %220 = vmatpush1.msra.mxu0 %v170
    %221 = vmatprep.subr.mxu0 0.0
    %222 = vmatpush1.msra.mxu0 %v171
    %223 = vmatprep.subr.mxu0 0.0
    %224 = vmatpush1.msra.mxu0 %v172
    %225 = vmatprep.subr.mxu0 0.0
    %226 = vmatpush1.msra.mxu0 %v173
    %227 = vmatprep.subr.mxu0 0.0
    %228 = vmatpush1.msra.mxu0 %v174
    %229 = vmatprep.subr.mxu0 0.0
    %230 = vmatpush1.msra.mxu0 %v175
    %231 = vmatprep.subr.mxu0 0.0
    %232 = vmatpush1.msra.mxu0 %v176
    %233 = vmatprep.subr.mxu0 0.0
    %234 = vmatpush1.msra.mxu0 %v177
    %235 = vmatprep.subr.mxu0 0.0
    %236 = vmatpush1.msra.mxu0 %v178
    %237 = vmatprep.subr.mxu0 0.0
    %238 = vmatpush1.msra.mxu0 %v179
    %239 = vmatprep.subr.mxu0 0.0
    %240 = vmatpush1.msra.mxu0 %v180
    %241 = vmatprep.subr.mxu0 0.0
    %242 = vmatpush1.msra.mxu0 %v181
    %243 = vmatprep.subr.mxu0 0.0
    %244 = vmatpush1.msra.mxu0 %v182
    %245 = vmatprep.subr.mxu0 0.0
    %246 = vmatpush1.msra.mxu0 %v183
    %247 = vmatprep.subr.mxu0 0.0
    %248 = vmatpush1.msra.mxu0 %v184
    %249 = vmatprep.subr.mxu0 0.0
    %250 = vmatpush1.msra.mxu0 %v185
    %251 = vmatprep.subr.mxu0 0.0
    %252 = vmatpush1.msra.mxu0 %v186
    %253 = vmatprep.subr.mxu0 0.0
    %254 = vmatpush1.msra.mxu0 %v187
    %255 = vmatprep.subr.mxu0 0.0
    %256 = vmatpush1.msra.mxu0 %v188
    %257 = vmatprep.subr.mxu0 0.0
    %258 = vmatpush1.msra.mxu0 %v189
    %259 = vmatprep.subr.mxu0 0.0
    %260 = vmatpush1.msra.mxu0 %v190
    %261 = vmatprep.subr.mxu0 0.0
    %262 = vmatpush1.msra.mxu0 %v191
    %263 = vmatprep.mubr.f32.mxu0 %v159
    %264 = vmatmul.mubr.f32.gmra.mrb[0].mxu0 %v158
    %v265 = vpop.f32.mrb[0].mxu0
    %v266 = vadd.f32 %v197, %v265
    %v267 = vpop.f32.mrb[0].mxu0
    %268 = vdwg.mxu0
    %v269 = vmax.f32 %v266, 0.0
    %v270 = vld [vmem:[%s5] sm:$0x1]
    %v272 = vlaneseq
    %v273 = vshrl.u32 %v272, 7
    %v274 = vsub.s32 0, %v273
    %v275 = vrot.slane %v270, %v274
    %v277 = vmul.f32 %v269, %v275
    %278 = vadd.xlane.f32.xlu0 %v277
    %v279 = vpop.xlane.xlu0 %278
    %s280 = sld [smem:[#allocation2]]
    %v281 = vstv %s280
    %v282 = vadd.f32 %v279, %v281
    %vm283 = vcmask 7168
    %284 = vst.msk [vmem:[%s7] sm:$0xff] %vm283, %v282
    // Predicated region
    $region42: #{tpu_custom_call.1} parent=1 // pred_check
      _
    $region43: #{tpu_custom_call.1} parent=1 // pred_check_branch
      %286 = sbr.rel (0) target = $region45
    $region44: #{tpu_custom_call.1} parent=1 // pred_region
      _
    $region45: #{tpu_custom_call.1} parent=1 // pred_fallthru
      _
    // Predicated region
    $region46: #{tpu_custom_call.1} parent=1 // pred_check
      _
    $region47: #{tpu_custom_call.1} parent=1 // pred_check_branch
      %288 = sbr.rel (0) target = $region49
    $region48: #{tpu_custom_call.1} parent=1 // pred_region
      _
    $region49: #{tpu_custom_call.1} parent=1 // pred_fallthru
      _
    %289 = vsyncpa [#allocation4], 1
    %290 = vsyncpa [#allocation6], 1

</llo_original>
